<compile_context>
chip_gen: v7x
topology: tpu7x:2x2x1
jax: 0.10.0
libtpu: 0.0.40
codegen_flags: <defaults>
</compile_context>

<pallas_src>
import jax
import jax.numpy as jnp
import numpy as np
from jax.experimental import pallas as pl
from jax.experimental.pallas import tpu as pltpu


def _get_pos_enc(d_model: int, maxlen: int, min_freq: float) -> np.ndarray:
    """Deterministic sinusoidal table, identical to the PyTorch module's _get_pos_enc."""
    position = np.arange(maxlen)
    freqs = min_freq ** (2 * (np.arange(d_model) // 2) / d_model)
    pos_enc = position[:, None] * freqs[None]
    pos_enc[:, ::2] = np.cos(pos_enc[:, ::2])
    pos_enc[:, 1::2] = np.sin(pos_enc[:, 1::2])
    return pos_enc.astype(np.float32)


def _round_up(x: int, m: int) -> int:
    return ((x + m - 1) // m) * m


def _gather_tile_kernel(idx_ref, table_ref, o_ref):
    # idx_ref:   (n_pad,) int32 flat indices, scalar-prefetched into SMEM.
    # table_ref: (maxlen, d_model) full table, resident in VMEM across grid steps.
    # o_ref:     (tile, d_model) lane-dense output tile.
    maxlen = table_ref.shape[0]
    tile = o_ref.shape[0]
    base = pl.program_id(0) * tile

    def copy_row(t, carry):
        idx = idx_ref[base + t]
        # PyTorch-style negative-index wrap, then clamp: the in-VMEM gather has
        # no runtime bounds check, so keep indices strictly inside [0, maxlen).
        idx = jnp.where(idx < 0, idx + maxlen, idx)
        idx = jnp.clip(idx, 0, maxlen - 1)
        o_ref[pl.ds(t, 1), :] = table_ref[pl.ds(idx, 1), :]
        return carry

    jax.lax.fori_loop(0, tile, copy_row, 0)


def positional_encoding_lookup(pos_enc: jax.Array, x: jax.Array, *, max_tile_rows: int = 512) -> jax.Array:
    """Pallas gather: returns pos_enc[x] with shape x.shape + (d_model,)."""
    maxlen, d_model = pos_enc.shape
    orig_shape = x.shape

    flat = x.reshape(-1).astype(jnp.int32)
    n = int(flat.shape[0])

    # ---- tile selection: whole 8-row sublane groups, minimal padding, >=2 tiles
    # when possible so v7x can shard the "parallel" axis across its two TCs. ----
    n8 = _round_up(max(n, 1), 8)
    groups = n8 // 8
    groups_per_tile_cap = max(max_tile_rows // 8, 1)
    n_tiles = max(-(-groups // groups_per_tile_cap), 1)
    if groups >= 2:
        n_tiles = max(n_tiles, 2)
    tile = (-(-groups // n_tiles)) * 8
    n_pad = n_tiles * tile

    if n_pad != n:
        # Padded rows gather row 0 (index 0) and are sliced off below; padding is
        # at most (n_tiles - 1 + 1) * 8 rows by construction.
        flat = jnp.pad(flat, (0, n_pad - n))

    itemsize = jnp.dtype(pos_enc.dtype).itemsize
    table_bytes = maxlen * d_model * itemsize
    out_tile_bytes = tile * d_model * itemsize
    # Table (possibly double-buffered by the pipeliner) + pipelined output tiles + slack.
    vmem_limit = int(min(max(2 * table_bytes + 3 * out_tile_bytes + (2 << 20), 4 << 20), 100 << 20))

    cost = pl.CostEstimate(
        flops=0,
        transcendentals=0,
        bytes_accessed=(
            n_pad * d_model * itemsize      # gathered rows read from the VMEM table
            + n_pad * d_model * itemsize    # output writeback
            + table_bytes                   # table DMA HBM -> VMEM (once)
            + n_pad * 4                     # indices
        ),
    )

    out = pl.pallas_call(
        _gather_tile_kernel,
        out_shape=jax.ShapeDtypeStruct((n_pad, d_model), pos_enc.dtype),
        grid_spec=pltpu.PrefetchScalarGridSpec(
            num_scalar_prefetch=1,  # flat index vector -> SMEM
            grid=(n_tiles,),
            in_specs=[
                # Whole table resident in VMEM (same block every grid step).
                pl.BlockSpec((maxlen, d_model), lambda i, idx_ref: (0, 0)),
            ],
            out_specs=pl.BlockSpec((tile, d_model), lambda i, idx_ref: (i, 0)),
        ),
        compiler_params=pltpu.CompilerParams(
            # Independent output tiles -> shard across v7x's two TensorCores.
            dimension_semantics=("parallel",),
            vmem_limit_bytes=vmem_limit,
        ),
        cost_estimate=cost,
    )(flat, pos_enc)

    return out[:n].reshape(orig_shape + (d_model,))


if __name__ == "__main__":
    # Small, deterministic configuration.
    d_model = 128
    maxlen = 64
    min_freq = 1e-4

    # Deterministic "parameter" (buffer) initialization — same formula as the module.
    pos_enc = jnp.asarray(_get_pos_enc(d_model, maxlen, min_freq))
    pos_enc_np = np.asarray(pos_enc)

    key = jax.random.PRNGKey(0)

    # Case 1: small index tensor (batch=2, seq=8); two 8-row tiles, no padding.
    x_small = jax.random.randint(key, shape=(2, 8), minval=0, maxval=maxlen, dtype=jnp.int32)
    y_small = jax.block_until_ready(positional_encoding_lookup(pos_enc, x_small))
    ref_small = pos_enc_np[np.asarray(x_small)]
    assert y_small.shape == x_small.shape + (d_model,)
    np.testing.assert_allclose(np.asarray(y_small), ref_small, rtol=0, atol=0)

    # Case 2: larger index tensor exercising a multi-tile grid (3 tiles x 400 rows, zero padding).
    x_big = jax.random.randint(
        jax.random.PRNGKey(1), shape=(4, 300), minval=0, maxval=maxlen, dtype=jnp.int32
    )
    y_big = jax.block_until_ready(positional_encoding_lookup(pos_enc, x_big))
    ref_big = pos_enc_np[np.asarray(x_big)]
    assert y_big.shape == x_big.shape + (d_model,)
    np.testing.assert_allclose(np.asarray(y_big), ref_big, rtol=0, atol=0)

    # Case 3: negative indices (PyTorch-style wrap handled inside the kernel).
    x_neg = jax.random.randint(
        jax.random.PRNGKey(2), shape=(2, 8), minval=-maxlen, maxval=maxlen, dtype=jnp.int32
    )
    y_neg = jax.block_until_ready(positional_encoding_lookup(pos_enc, x_neg))
    x_neg_np = np.asarray(x_neg)
    ref_neg = pos_enc_np[np.where(x_neg_np < 0, x_neg_np + maxlen, x_neg_np)]
    assert y_neg.shape == x_neg.shape + (d_model,)
    np.testing.assert_allclose(np.asarray(y_neg), ref_neg, rtol=0, atol=0)

    print("KERNEL_OK")
</pallas_src>

<mosaic_0001>
module attributes {stable_mosaic.version = 11 : i64} {
  func.func @_gather_tile_kernel(%arg0: i32, %arg1: memref<16xi32, #tpu.memory_space<smem>>, %arg2: memref<64x128xf32, #tpu.memory_space<vmem>>, %arg3: memref<8x128xf32, #tpu.memory_space<vmem>>) attributes {dimension_semantics = [#tpu.dimension_semantics<parallel>], iteration_bounds = array<i64: 2>, scalar_prefetch = 1 : i64, scratch_operands = 0 : i64, tpu.core_type = #tpu.core_type<tc>, window_params = [{pipeline_mode = #tpu.pipeline_mode<synchronous>, transform_indices = @transform_0, window_bounds = array<i64: 64, 128>}, {transform_indices = @transform_1, window_bounds = array<i64: 8, 128>}]} {
    %c8_i32 = arith.constant 8 : i32
    %0 = arith.muli %arg0, %c8_i32 : i32
    %c0_i32 = arith.constant 0 : i32
    %c8_i32_0 = arith.constant 8 : i32
    %1 = arith.addi %c0_i32, %c8_i32_0 : i32
    %c1_i32 = arith.constant 1 : i32
    scf.for %arg4 = %c0_i32 to %1 step %c1_i32  : i32 {
      %2 = arith.addi %0, %arg4 : i32
      %3 = arith.index_cast %2 : i32 to index
      %4 = memref.load %arg1[%3] : memref<16xi32, #tpu.memory_space<smem>>
      %c0_i32_2 = arith.constant 0 : i32
      %5 = arith.cmpi slt, %4, %c0_i32_2 : i32
      %c64_i32 = arith.constant 64 : i32
      %6 = arith.addi %4, %c64_i32 : i32
      %7 = arith.select %5, %6, %4 : i32
      %c0_i32_3 = arith.constant 0 : i32
      %c63_i32 = arith.constant 63 : i32
      %8 = arith.maxsi %c0_i32_3, %7 : i32
      %9 = arith.minsi %c63_i32, %8 : i32
      %10 = arith.index_cast %9 : i32 to index
      %c0 = arith.constant 0 : index
      %11 = vector.load %arg2[%10, %c0] : memref<64x128xf32, #tpu.memory_space<vmem>>, vector<1x128xf32>
      %12 = arith.index_cast %arg4 : i32 to index
      %c0_4 = arith.constant 0 : index
      %13 = vector.load %arg3[%12, %c0_4] : memref<8x128xf32, #tpu.memory_space<vmem>>, vector<1x128xf32>
      tpu.vector_store %arg3[%12, %c0_4], %11 {strides = array<i32>} : memref<8x128xf32, #tpu.memory_space<vmem>>, vector<1x128xf32>,
    }
    %c8_i32_1 = arith.constant 8 : i32
    return
  }
  func.func @transform_0(%arg0: i32, %arg1: memref<16xi32, #tpu.memory_space<smem>>) -> (i32, i32) {
    %c0_i32 = arith.constant 0 : i32
    %c0_i32_0 = arith.constant 0 : i32
    %c0_i32_1 = arith.constant 0 : i32
    return %c0_i32, %c0_i32_0 : i32, i32
  }
  func.func @transform_1(%arg0: i32, %arg1: memref<16xi32, #tpu.memory_space<smem>>) -> (i32, i32) {
    %c0_i32 = arith.constant 0 : i32
    %c0_i32_0 = arith.constant 0 : i32
    return %arg0, %c0_i32 : i32, i32
  }
}

</mosaic_0001>

<llo_original>
// kernel: tpu_custom_call.1
$region0: #{tpu_custom_call.1}
  #allocation0 [shape = 'u32[]', space=smem, size = 0x4, offset = 0x4, fixed_abs, tag = 'smem constant byte address 0x4 - core index']
  #allocation1 [shape = 'u32[144,128]{1,0:T(1,128)}', space=vmem, size = 0x12000, scoped, tag = 'internal scratch']
  #allocation2 [shape = 's32[1]{0}', space=sflag, size = 0x4, scoped, tag = 'scoped memory for tpu_custom_call.1']
  #allocation3 [shape = 'u8[512]{0}', space=smem, size = 0x200, scoped, tag = 'prefetched SMEM operand 0']
  %s0 = inlined_call_operand.hbm [shape: s32[16], index: 0, kind: input, shape index: {}]
  %s1 = inlined_call_operand.hbm [shape: f32[64,128], index: 1, kind: input, shape index: {}]
  %s2 = inlined_call_operand.hbm [shape: f32[16,128], index: 2, kind: output, shape index: {}]
  %s3 = sld [smem:[#allocation0]]
  $region48: #{tpu_custom_call.1} parent=0
    _
  %s5 = ssub.s32 1, %s3
  %s6 = scalar_select 0, %s5, %s3
  %8 = dma.hbm_to_smem %s0, 16, [#allocation3], [#allocation2]
  %9 = dma.done [#allocation2], 16
  %10 = sfence
  $region1: #{tpu_custom_call.1} parent=0
    #allocation4 [shape = 'u8[32768]{0}', space=vmem, size = 0x8000, scoped, tag = 'input window, operand 1, single buffered']
    #allocation5 [shape = 's32[2]{0}', space=sflag, size = 0x8, scoped, tag = 'scoped memory for tpu_custom_call.1']
    #allocation6 [shape = 's32[2]{0}', space=sflag, size = 0x8, scoped, tag = 'scoped memory for tpu_custom_call.1']
    #allocation7 [shape = 'u8[8192]{0}', space=vmem, size = 0x2000, scoped, tag = 'output window, operand 0']
    %11 = vsyncpa [#allocation5], 0
    %12 = vsyncpa [#allocation6], 0
    %s13 = scalar_lea.sflag [#allocation6], 1
    %14 = vsyncpa %s13, 0
    loop: start=0, step=1, limit=4
    $region2: #{tpu_custom_call.1} parent=1 // loop_pre_header
      _
    $region3: #{tpu_custom_call.1} parent=1 // loop_header
      %s16 = sphi 0, %s20
      %p17 = scmp.ge.s32.totalorder %s16, 4
      %s24 = sphi 0, %s24
      %s26 = sphi 0, %s24
      %s27 = sphi 0, %s26
      %s41 = sphi 0, %s27
      %s47 = sphi 0, %s49
      %s50 = sphi 0, %s47
      %s51 = sphi 0, %s50
      %s67 = sphi 0, %s51
    $region4: #{tpu_custom_call.1} parent=1 // loop_header_branch
      %19 = sbr.rel (%p17) target = $region8
    $region5: #{tpu_custom_call.1} parent=1 // loop_body
      %s21 = ssub.s32 %s16, 1
      %s22 = ssub.s32 %s16, 2
      %s23 = sadd.s32 %s16, 1
      %s25 = sadd.s32 %s24, 1
      %p28 = scmp.eq.s32.totalorder %s16, 1
      %p29 = scmp.ne.s32.totalorder %s24, %s26
      %p30 = scmp.eq.s32.totalorder %s16, 0
      %p31 = por %p29, %p30
      %p32 = scmp.ne.s32.totalorder %s24, %s26
      %p33 = scmp.eq.s32.totalorder %s21, 1
      %p34 = por %p32, %p33
      %p35 = scmp.ne.s32.totalorder %s26, %s27
      %p36 = scmp.eq.s32.totalorder %s21, 0
      %p37 = por %p35, %p36
      %p38 = scmp.ne.s32.totalorder %s26, %s27
      %p39 = scmp.eq.s32.totalorder %s22, 1
      %p40 = por %p38, %p39
      %p42 = scmp.ne.s32.totalorder %s27, %s41
      %p43 = scmp.eq.s32.totalorder %s22, 0
      %p44 = por %p42, %p43
      %s45 = ssub.s32 %s16, %s23
      %p46 = scmp.eq.s32.totalorder %s45, 0
      %s48 = sadd.s32 %s47, 1
      %s49 = scalar_select %p46, %s47, %s48
      %p52 = pneg %p46
      %p53 = scmp.eq.s32.totalorder %s16, 1
      %p54 = por %p52, %p53
      %p55 = scmp.ne.s32.totalorder %s47, %s50
      %p56 = scmp.eq.s32.totalorder %s16, 0
      %p57 = por %p55, %p56
      %p58 = scmp.ne.s32.totalorder %s47, %s50
      %p59 = scmp.eq.s32.totalorder %s21, 1
      %p60 = por %p58, %p59
      %p61 = scmp.ne.s32.totalorder %s50, %s51
      %p62 = scmp.eq.s32.totalorder %s21, 0
      %p63 = por %p61, %p62
      %p64 = scmp.ne.s32.totalorder %s50, %s51
      %p65 = scmp.eq.s32.totalorder %s22, 1
      %p66 = por %p64, %p65
      %p68 = scmp.ne.s32.totalorder %s51, %s67
      %p69 = scmp.eq.s32.totalorder %s22, 0
      %p70 = por %p68, %p69
      %p71 = scmp.le.s32.totalorder 1, %s16
      %p72 = scmp.lt.s32.totalorder %s16, 3
      %p73 = pnand %p71, %p72
      %p74 = pneg %p73
      // Predicated region
      $region9: #{tpu_custom_call.1} parent=5 // pred_check
        _
      $region10: #{tpu_custom_call.1} parent=5 // pred_check_branch
        %76 = sbr.rel (%p73) target = $region12
      $region11: #{tpu_custom_call.1} parent=5 // pred_region
        %s77 = ssub.s32 %s16, 1
        // Predicated region
        $region13: #{tpu_custom_call.1} parent=11 // pred_check
          %p78 = pneg %p37
        $region14: #{tpu_custom_call.1} parent=11 // pred_check_branch
          %80 = sbr.rel (%p78) target = $region16
        $region15: #{tpu_custom_call.1} parent=11 // pred_region
          %s82 = ssub.s32 1024, 1024
          %83 = vsyncadd [#allocation5], %s82
          %s84 = sshll.u32 [#allocation4], 4
          %s85 = int_to_ptr.vmem [resolvable:$true] %s84
          %90 = dma.hbm_to_vmem [thread:$0]  %s1, 1024, %s85, [#allocation5], 128, 128, 8
        $region16: #{tpu_custom_call.1} parent=11 // pred_fallthru
          _
      $region12: #{tpu_custom_call.1} parent=5 // pred_fallthru
        _
      %p91 = scmp.lt.s32.totalorder %s16, 2
      // Predicated region
      $region17: #{tpu_custom_call.1} parent=5 // pred_check
        %p92 = pneg %p91
      $region18: #{tpu_custom_call.1} parent=5 // pred_check_branch
        %94 = sbr.rel (%p92) target = $region20
      $region19: #{tpu_custom_call.1} parent=5 // pred_region
        _
      $region20: #{tpu_custom_call.1} parent=5 // pred_fallthru
        _
      %p95 = scmp.le.s32.totalorder 1, %s16
      %p96 = scmp.lt.s32.totalorder %s16, 3
      %p97 = pnand %p95, %p96
      %p98 = pneg %p97
      // Predicated region
      $region21: #{tpu_custom_call.1} parent=5 // pred_check
        _
      $region22: #{tpu_custom_call.1} parent=5 // pred_check_branch
        %100 = sbr.rel (%p97) target = $region24
      $region23: #{tpu_custom_call.1} parent=5 // pred_region
        %s101 = ssub.s32 %s16, 1
        // Predicated region
        $region25: #{tpu_custom_call.1} parent=23 // pred_check
          %p102 = pneg %p37
        $region26: #{tpu_custom_call.1} parent=23 // pred_check_branch
          %104 = sbr.rel (%p102) target = $region28
        $region27: #{tpu_custom_call.1} parent=23 // pred_region
          %105 = dma.done [#allocation5], 1024
        $region28: #{tpu_custom_call.1} parent=23 // pred_fallthru
          _
        %p106 = pneg %p37
        %p107 = pneg %p34
        %p108 = pneg %p63
        %p109 = pneg %p60
        %s110 = sand.u32 %s50, 1
        %s111 = scalar_lea.sflag [#allocation6], %s110
        %s112 = sand.u32 %s50, 1
        %s113 = smul.addr %s112, 8
        %s114 = scalar_lea.vmem [#allocation7], %s113
        %s115 = smul.u32 %s21, 8
        loop: start=0, step=1, limit=8
        $region29: #{tpu_custom_call.1} parent=23 // loop_pre_header
          _
        $region30: #{tpu_custom_call.1} parent=23 // loop_header
          %s117 = sphi 0, %s121
          %p118 = scmp.ge.s32.totalorder %s117, 8
        $region31: #{tpu_custom_call.1} parent=23 // loop_header_branch
          %120 = sbr.rel (%p118) target = $region35
        $region32: #{tpu_custom_call.1} parent=23 // loop_body
          %s122 = sadd.s32 %s115, %s117
          %s123 = sld [smem:[#allocation3 + %s122]]
          %p124 = scmp.lt.s32.totalorder %s123, 0
          %s125 = sadd.s32 %s123, 64
          %s126 = scalar_select %p124, %s125, %s123
          %p127 = scmp.gt.s32.totalorder %s126, 0
          %s128 = scalar_select %p127, %s126, 0
          %p129 = scmp.lt.s32.totalorder %s128, 63
          %s130 = scalar_select %p129, %s128, 63
          %s131 = scalar_lea.vmem [#allocation4], %s130
          %v132 = vld [vmem:[%s131] sm:$0x1]
          %s133 = scalar_lea.vmem %s114, %s117 [#allocation7]
          %134 = vst [vmem:[%s133] sm:$0x1] %v132
        $region33: #{tpu_custom_call.1} parent=23 // loop_footer
          %s121 = sadd.s32 1, %s117
        $region34: #{tpu_custom_call.1} parent=23 // loop_footer_branch
          %116 = sbr.rel target = $region30
        $region35: #{tpu_custom_call.1} parent=23 // loop_exit
          _
        %s135 = sand.u32 %s50, 1
        %s136 = scalar_lea.sflag [#allocation6], %s135
        %s137 = sand.u32 %s50, 1
        %s138 = smul.addr %s137, 8
        %s139 = scalar_lea.vmem [#allocation7], %s138
        // Predicated region
        $region36: #{tpu_custom_call.1} parent=23 // pred_check
          %p140 = pneg %p60
        $region37: #{tpu_custom_call.1} parent=23 // pred_check_branch
          %142 = sbr.rel (%p140) target = $region39
        $region38: #{tpu_custom_call.1} parent=23 // pred_region
          %s144 = ssub.s32 128, 128
          %145 = vsyncadd %s136, %s144
          %s146 = smul.addr %s21, 128
          %s147 = scalar_lea.hbm %s2, %s146
          %s149 = sshll.u32 %s139, 4
          %s150 = int_to_ptr.vmem [resolvable:$true] %s149
          %152 = dma.vmem_to_hbm [thread:$0]  %s150, 128, %s147, %s136
        $region39: #{tpu_custom_call.1} parent=23 // pred_fallthru
          _
      $region24: #{tpu_custom_call.1} parent=5 // pred_fallthru
        _
      %p153 = scmp.le.s32.totalorder 2, %s16
      // Predicated region
      $region40: #{tpu_custom_call.1} parent=5 // pred_check
        %p154 = pneg %p153
      $region41: #{tpu_custom_call.1} parent=5 // pred_check_branch
        %156 = sbr.rel (%p154) target = $region43
      $region42: #{tpu_custom_call.1} parent=5 // pred_region
        %s157 = ssub.s32 %s16, 2
        // Predicated region
        $region44: #{tpu_custom_call.1} parent=42 // pred_check
          %p158 = pneg %p66
        $region45: #{tpu_custom_call.1} parent=42 // pred_check_branch
          %160 = sbr.rel (%p158) target = $region47
        $region46: #{tpu_custom_call.1} parent=42 // pred_region
          %s161 = sand.u32 %s51, 1
          %s162 = scalar_lea.sflag [#allocation6], %s161
          %s163 = sand.u32 %s51, 1
          %s164 = smul.addr %s163, 8
          %s165 = scalar_lea.vmem [#allocation7], %s164
          %166 = dma.done %s162, 128
        $region47: #{tpu_custom_call.1} parent=42 // pred_fallthru
          _
      $region43: #{tpu_custom_call.1} parent=5 // pred_fallthru
        _
    $region6: #{tpu_custom_call.1} parent=1 // loop_footer
      %s20 = sadd.s32 1, %s16
    $region7: #{tpu_custom_call.1} parent=1 // loop_footer_branch
      %15 = sbr.rel target = $region3
    $region8: #{tpu_custom_call.1} parent=1 // loop_exit
      _
    %167 = vsyncpa [#allocation5], 1
    %s168 = scalar_lea.sflag [#allocation5], 1
    %169 = vsyncpa %s168, 1
    %170 = vsyncpa [#allocation6], 1
    %s171 = scalar_lea.sflag [#allocation6], 1
    %172 = vsyncpa %s171, 1

</llo_original>
